<compile_context>
chip_gen: v7x
topology: tpu7x:2x2x1
jax: 0.10.0
libtpu: 0.0.40
codegen_flags: <defaults>
</compile_context>

<pallas_src>
import jax
import jax.numpy as jnp
from jax.experimental import pallas as pl
from jax.experimental.pallas import tpu as pltpu


def _round_up(x, m):
    return ((x + m - 1) // m) * m


def _sublane_multiple(dtype):
    # Rows packed per sublane: f32 -> 8, bf16 -> 16, int8/fp8 -> 32.
    return 8 * max(1, 4 // jnp.dtype(dtype).itemsize)


def _lane_granule(dim):
    # Match the 256-wide MXU (v6e/v7x) when the dimension allows, else 128.
    return 256 if dim >= 256 else 128


def _vmem_budget_bytes():
    cap = 64 * 1024 * 1024  # conservative fallback (v7x per-TC VMEM)
    try:
        cap = int(pltpu.get_tpu_info().vmem_capacity_bytes)
    except Exception:
        pass
    # Leave headroom for compiler internals; cap the scoped limit at 100 MiB.
    return min(cap * 3 // 4, 100 * 1024 * 1024)


def _mul_linear_kernel_f32out(x_ref, w_ref, b_ref, o_ref):
    # f32 output: accumulate directly into the resident output block.
    @pl.when(pl.program_id(2) == 0)
    def _():
        o_ref[...] = jnp.broadcast_to(b_ref[...], o_ref.shape)

    o_ref[...] += jnp.dot(x_ref[...], w_ref[...],
                          preferred_element_type=jnp.float32)


def _mul_linear_kernel_acc(x_ref, w_ref, b_ref, o_ref, acc_ref):
    # Non-f32 output: f32 scratch accumulator + bias-add/cast epilogue.
    @pl.when(pl.program_id(2) == 0)
    def _():
        acc_ref[...] = jnp.zeros_like(acc_ref)

    acc_ref[...] += jnp.dot(x_ref[...], w_ref[...],
                            preferred_element_type=jnp.float32)

    @pl.when(pl.program_id(2) == pl.num_programs(2) - 1)
    def _():
        o_ref[...] = (acc_ref[...] + b_ref[...]).astype(o_ref.dtype)


def prepare_mul_linear(input_scale, weight, bias, *, tn=512, tk=1024,
                       mxu_input_dtype=jnp.bfloat16):
    """One-time weight prep: fold input_scale into W, transpose to (K, N),
    pad to tile multiples, optionally cast for the MXU.

    Cache the returned dict (e.g. close over it under jit) so this O(K*N)
    HBM pass is not redone on every forward call.
    """
    N, K = weight.shape
    tk = min(tk, _round_up(K, _lane_granule(K)))
    tn = min(tn, _round_up(N, _lane_granule(N)))
    K_pad = _round_up(K, tk)
    N_pad = _round_up(N, tn)

    # (x * s) @ W.T == x @ (W * s).T  -- fold scale, pre-transpose to (K, N).
    w_t = (weight * input_scale[None, :]).T
    if mxu_input_dtype is not None:
        w_t = w_t.astype(mxu_input_dtype)
    if (K_pad, N_pad) != (K, N):
        w_t = jnp.pad(w_t, ((0, K_pad - K), (0, N_pad - N)))

    bias2d = bias.reshape(1, N).astype(jnp.float32)
    if N_pad != N:
        bias2d = jnp.pad(bias2d, ((0, 0), (0, N_pad - N)))

    return {"w_t": w_t, "bias": bias2d, "K": K, "N": N,
            "tk": tk, "tn": tn, "mxu_input_dtype": mxu_input_dtype}


def mul_linear_forward(x, prepared, *, tm=512):
    """Fused MulLinear forward: (x * input_scale) @ weight.T + bias."""
    orig_shape = x.shape
    K, N = prepared["K"], prepared["N"]
    tk, tn = prepared["tk"], prepared["tn"]
    w_t, bias2d = prepared["w_t"], prepared["bias"]
    mxu_dtype = prepared["mxu_input_dtype"]

    out_dtype = x.dtype
    x2d = x.reshape(-1, K)
    M = x2d.shape[0]
    if mxu_dtype is not None:
        x2d = x2d.astype(mxu_dtype)
    in_dtype = x2d.dtype

    K_pad, N_pad = w_t.shape
    in_bytes = jnp.dtype(in_dtype).itemsize
    out_bytes = jnp.dtype(out_dtype).itemsize
    use_scratch = jnp.dtype(out_dtype) != jnp.float32

    # Dtype-aware sublane rounding for tm / M padding.
    sub = _sublane_multiple(in_dtype)
    tm = _round_up(min(tm, _round_up(M, sub)), sub)

    budget = _vmem_budget_bytes()

    def footprint(tm_):
        f = 2 * tm_ * tk * in_bytes          # x, double-buffered
        f += 2 * tk * tn * in_bytes          # W, double-buffered
        f += 2 * tm_ * tn * out_bytes        # out, double-buffered
        f += 2 * tn * 4                      # bias
        if use_scratch:
            f += tm_ * tn * 4                # f32 accumulator
        return f

    # Serving-style heuristic: cover all of M in one block (weight streamed
    # from HBM exactly once), but only if >= 2 blocks remain along N so v7x's
    # two TensorCores both get work, and the working set stays in budget.
    M_pad_full = _round_up(M, sub)
    tm_cap = 2048 if budget >= 80 * 1024 * 1024 else 1024
    if (M_pad_full <= tm_cap and N_pad // tn >= 2
            and footprint(M_pad_full) <= budget):
        tm = M_pad_full

    # Safety: shrink tm if a caller-supplied tiling would blow the budget.
    while footprint(tm) > budget and tm > sub:
        tm = max(sub, _round_up(tm // 2, sub))

    M_pad = _round_up(M, tm)
    if (M_pad, K_pad) != (M, K):
        x2d = jnp.pad(x2d, ((0, M_pad - M), (0, K_pad - K)))

    grid = (M_pad // tm, N_pad // tn, K_pad // tk)
    n_i, n_j = grid[0], grid[1]

    bytes_accessed = (x2d.size * in_bytes * n_j          # x re-read per N block
                      + w_t.size * in_bytes * n_i        # W re-read per M block
                      + bias2d.size * 4 * n_i
                      + M_pad * N_pad * out_bytes)

    kernel = _mul_linear_kernel_acc if use_scratch else _mul_linear_kernel_f32out
    scratch = [pltpu.VMEM((tm, tn), jnp.float32)] if use_scratch else []

    out2d = pl.pallas_call(
        kernel,
        out_shape=jax.ShapeDtypeStruct((M_pad, N_pad), out_dtype),
        grid_spec=pltpu.PrefetchScalarGridSpec(
            num_scalar_prefetch=0,
            grid=grid,
            in_specs=[
                pl.BlockSpec((tm, tk), lambda i, j, k: (i, k)),   # x
                pl.BlockSpec((tk, tn), lambda i, j, k: (k, j)),   # W (scaled, T)
                pl.BlockSpec((1, tn), lambda i, j, k: (0, j)),    # bias
            ],
            out_specs=pl.BlockSpec((tm, tn), lambda i, j, k: (i, j)),
            scratch_shapes=scratch,
        ),
        compiler_params=pltpu.CompilerParams(
            dimension_semantics=("parallel", "parallel", "arbitrary"),
            vmem_limit_bytes=budget,
        ),
        cost_estimate=pl.CostEstimate(
            flops=2 * M_pad * N_pad * K_pad,
            transcendentals=0,
            bytes_accessed=bytes_accessed,
        ),
    )(x2d, w_t, bias2d)

    return out2d[:M, :N].reshape(*orig_shape[:-1], N)


def mul_linear(x, input_scale, weight, bias, *, mxu_input_dtype=jnp.bfloat16,
               tm=512, tn=512, tk=1024):
    """One-shot convenience wrapper (prep + forward). Prefer caching the
    prepared weight via prepare_mul_linear() for repeated application."""
    prepared = prepare_mul_linear(input_scale, weight, bias, tn=tn, tk=tk,
                                  mxu_input_dtype=mxu_input_dtype)
    return mul_linear_forward(x, prepared, tm=tm)


if __name__ == "__main__":
    key = jax.random.PRNGKey(0)
    k_x, k_w, k_b, k_s = jax.random.split(key, 4)

    batch, seq, in_features, out_features = 2, 8, 128, 256

    # Deterministic example inputs (torch.nn.Linear weight layout: [N, K]).
    x = jax.random.normal(k_x, (batch, seq, in_features), dtype=jnp.float32)
    weight = jax.random.normal(k_w, (out_features, in_features),
                               dtype=jnp.float32) * 0.1
    bias = jax.random.normal(k_b, (out_features,), dtype=jnp.float32) * 0.1
    input_scale = jax.random.uniform(k_s, (in_features,), dtype=jnp.float32,
                                     minval=0.5, maxval=2.0)

    # TODO(synk): _update_linear/_recover_linear are in-place torch buffer
    # mutations; here the scale fold is plain-JAX glue inside prepare_mul_linear.

    # Reference: the literal module forward, (X * scale) then Linear.
    ref = (x * input_scale) @ weight.T + bias

    # 1) Default fast path: bf16 MXU inputs, f32 accumulation, f32 output
    #    (no scratch; prepared weight reused across calls).
    prepared_bf16 = prepare_mul_linear(input_scale, weight, bias)
    out = jax.block_until_ready(mul_linear_forward(x, prepared_bf16))
    assert out.shape == (batch, seq, out_features)
    assert jnp.allclose(out, ref, atol=1e-1, rtol=5e-2), \
        float(jnp.max(jnp.abs(out - ref)))

    # 2) Exact-precision path: f32 MXU inputs.
    prepared_f32 = prepare_mul_linear(input_scale, weight, bias,
                                      mxu_input_dtype=None)
    out_f32 = jax.block_until_ready(mul_linear_forward(x, prepared_f32))
    assert jnp.allclose(out_f32, ref, atol=1e-3, rtol=1e-3), \
        float(jnp.max(jnp.abs(out_f32 - ref)))

    # 3) bf16 output exercises the f32-scratch accumulator + epilogue path.
    out_b = jax.block_until_ready(
        mul_linear_forward(x.astype(jnp.bfloat16), prepared_bf16))
    assert out_b.dtype == jnp.bfloat16
    assert jnp.allclose(out_b.astype(jnp.float32), ref, atol=1.5e-1, rtol=1e-1), \
        float(jnp.max(jnp.abs(out_b.astype(jnp.float32) - ref)))

    print("KERNEL_OK")
</pallas_src>

<mosaic_0001>
module attributes {stable_mosaic.version = 11 : i64} {
  func.func @_mul_linear_kernel_f32out(%arg0: i32, %arg1: i32, %arg2: i32, %arg3: memref<16x128xbf16, #tpu.memory_space<vmem>>, %arg4: memref<128x256xbf16, #tpu.memory_space<vmem>>, %arg5: memref<1x256xf32, #tpu.memory_space<vmem>>, %arg6: memref<16x256xf32, #tpu.memory_space<vmem>>) attributes {dimension_semantics = [#tpu.dimension_semantics<parallel>, #tpu.dimension_semantics<parallel>, #tpu.dimension_semantics<arbitrary>], iteration_bounds = array<i64: 1, 1, 1>, scalar_prefetch = 0 : i64, scratch_operands = 0 : i64, tpu.core_type = #tpu.core_type<tc>, window_params = [{transform_indices = @transform_0, window_bounds = array<i64: 16, 128>}, {transform_indices = @transform_1, window_bounds = array<i64: 128, 256>}, {transform_indices = @transform_2, window_bounds = array<i64: 1, 256>}, {transform_indices = @transform_3, window_bounds = array<i64: 16, 256>}]} {
    %c0_i32 = arith.constant 0 : i32
    %0 = arith.cmpi eq, %arg2, %c0_i32 : i32
    %1 = arith.extui %0 : i1 to i32
    %c0_i32_0 = arith.constant 0 : i32
    %2 = arith.cmpi ne, %1, %c0_i32_0 : i32
    scf.if %2 {
      %c0_8 = arith.constant 0 : index
      %c0_9 = arith.constant 0 : index
      %9 = vector.load %arg5[%c0_8, %c0_9] : memref<1x256xf32, #tpu.memory_space<vmem>>, vector<1x256xf32>
      %10 = vector.shape_cast %9 : vector<1x256xf32> to vector<1x256xf32>
      %11 = vector.broadcast %10 : vector<1x256xf32> to vector<16x256xf32>
      %c0_10 = arith.constant 0 : index
      %c0_11 = arith.constant 0 : index
      %12 = vector.load %arg6[%c0_10, %c0_11] : memref<16x256xf32, #tpu.memory_space<vmem>>, vector<16x256xf32>
      tpu.vector_store %arg6[%c0_10, %c0_11], %11 {strides = array<i32>} : memref<16x256xf32, #tpu.memory_space<vmem>>, vector<16x256xf32>,
    } else {
    }
    %c0 = arith.constant 0 : index
    %c0_1 = arith.constant 0 : index
    %3 = vector.load %arg6[%c0, %c0_1] : memref<16x256xf32, #tpu.memory_space<vmem>>, vector<16x256xf32>
    %c0_2 = arith.constant 0 : index
    %c0_3 = arith.constant 0 : index
    %4 = vector.load %arg3[%c0_2, %c0_3] : memref<16x128xbf16, #tpu.memory_space<vmem>>, vector<16x128xbf16>
    %c0_4 = arith.constant 0 : index
    %c0_5 = arith.constant 0 : index
    %5 = vector.load %arg4[%c0_4, %c0_5] : memref<128x256xbf16, #tpu.memory_space<vmem>>, vector<128x256xbf16>
    %cst = arith.constant dense<0.000000e+00> : vector<16x256xf32>
    %6 = tpu.matmul %4, %5, %cst {dimension_numbers = #tpu.dot_dimension_numbers<[1], [0], [0], [1], [0, 0, 1, 1], [], []>} : vector<16x128xbf16>, vector<128x256xbf16>, vector<16x256xf32> -> vector<16x256xf32>
    %7 = arith.addf %3, %6 : vector<16x256xf32>
    %c0_6 = arith.constant 0 : index
    %c0_7 = arith.constant 0 : index
    %8 = vector.load %arg6[%c0_6, %c0_7] : memref<16x256xf32, #tpu.memory_space<vmem>>, vector<16x256xf32>
    tpu.vector_store %arg6[%c0_6, %c0_7], %7 {strides = array<i32>} : memref<16x256xf32, #tpu.memory_space<vmem>>, vector<16x256xf32>,
    return
  }
  func.func @transform_0(%arg0: i32, %arg1: i32, %arg2: i32) -> (i32, i32) {
    %c0_i32 = arith.constant 0 : i32
    return %arg0, %arg2 : i32, i32
  }
  func.func @transform_1(%arg0: i32, %arg1: i32, %arg2: i32) -> (i32, i32) {
    %c0_i32 = arith.constant 0 : i32
    return %arg2, %arg1 : i32, i32
  }
  func.func @transform_2(%arg0: i32, %arg1: i32, %arg2: i32) -> (i32, i32) {
    %c0_i32 = arith.constant 0 : i32
    %c0_i32_0 = arith.constant 0 : i32
    return %c0_i32, %arg1 : i32, i32
  }
  func.func @transform_3(%arg0: i32, %arg1: i32, %arg2: i32) -> (i32, i32) {
    %c0_i32 = arith.constant 0 : i32
    return %arg0, %arg1 : i32, i32
  }
}

</mosaic_0001>

<llo_original>
// kernel: tpu_custom_call.1
$region0: #{tpu_custom_call.1}
  #allocation0 [shape = 'u32[]', space=smem, size = 0x4, offset = 0x4, fixed_abs, tag = 'smem constant byte address 0x4 - core index']
  #allocation1 [shape = 'u32[144,128]{1,0:T(1,128)}', space=vmem, size = 0x12000, scoped, tag = 'internal scratch']
  %s0 = inlined_call_operand.hbm [shape: bf16[16,128], index: 0, kind: input, shape index: {}]
  %s1 = inlined_call_operand.hbm [shape: bf16[128,256], index: 1, kind: input, shape index: {}]
  %s2 = inlined_call_operand.vmem [shape: f32[1,256], index: 2, kind: input, shape index: {}]
  %s3 = inlined_call_operand.hbm [shape: f32[16,256], index: 3, kind: output, shape index: {}]
  %s4 = sld [smem:[#allocation0]]
  $region34: #{tpu_custom_call.1} parent=0
    _
  %s6 = ssub.s32 1, %s4
  %s7 = scalar_select 0, %s6, %s4
  $region1: #{tpu_custom_call.1} parent=0
    #allocation2 [shape = 'u8[4096]{0}', space=vmem, size = 0x1000, scoped, tag = 'input window, operand 0, single buffered']
    #allocation3 [shape = 's32[1]{0}', space=sflag, size = 0x4, scoped, tag = 'scoped memory for tpu_custom_call.1']
    #allocation4 [shape = 's32[1]{0}', space=sflag, size = 0x4, scoped, tag = 'scoped memory for tpu_custom_call.1']
    #allocation5 [shape = 'u8[65536]{0}', space=vmem, size = 0x10000, scoped, tag = 'input window, operand 1, single buffered']
    #allocation6 [shape = 's32[1]{0}', space=sflag, size = 0x4, scoped, tag = 'scoped memory for tpu_custom_call.1']
    #allocation7 [shape = 'u8[16384]{0}', space=vmem, size = 0x4000, scoped, tag = 'output window, operand 0, single buffered']
    %8 = vsyncpa [#allocation3], 0
    %9 = vsyncpa [#allocation6], 0
    %10 = vsyncpa [#allocation4], 0
    // Predicated region
    $region2: #{tpu_custom_call.1} parent=1 // pred_check
      _
    $region3: #{tpu_custom_call.1} parent=1 // pred_check_branch
      %12 = sbr.rel (0) target = $region5
    $region4: #{tpu_custom_call.1} parent=1 // pred_region
      %s14 = ssub.s32 128, 128
      %15 = vsyncadd [#allocation3], %s14
      %s16 = sshll.u32 [#allocation2], 4
      %s17 = int_to_ptr.vmem [resolvable:$true] %s16
      %22 = dma.hbm_to_vmem [thread:$0]  %s0, 128, %s17, [#allocation3], 64, 64, 4
    $region5: #{tpu_custom_call.1} parent=1 // pred_fallthru
      _
    // Predicated region
    $region6: #{tpu_custom_call.1} parent=1 // pred_check
      _
    $region7: #{tpu_custom_call.1} parent=1 // pred_check_branch
      %24 = sbr.rel (0) target = $region9
    $region8: #{tpu_custom_call.1} parent=1 // pred_region
      %s26 = ssub.s32 2048, 2048
      %27 = vsyncadd [#allocation6], %s26
      %s28 = sshll.u32 [#allocation5], 4
      %s29 = int_to_ptr.vmem [resolvable:$true] %s28
      %34 = dma.hbm_to_vmem [thread:$0]  %s1, 2048, %s29, [#allocation6], 128, 128, 8
    $region9: #{tpu_custom_call.1} parent=1 // pred_fallthru
      _
    // Predicated region
    $region10: #{tpu_custom_call.1} parent=1 // pred_check
      _
    $region11: #{tpu_custom_call.1} parent=1 // pred_check_branch
      %36 = sbr.rel (0) target = $region13
    $region12: #{tpu_custom_call.1} parent=1 // pred_region
      _
    $region13: #{tpu_custom_call.1} parent=1 // pred_fallthru
      _
    // Predicated region
    $region14: #{tpu_custom_call.1} parent=1 // pred_check
      _
    $region15: #{tpu_custom_call.1} parent=1 // pred_check_branch
      %38 = sbr.rel (0) target = $region17
    $region16: #{tpu_custom_call.1} parent=1 // pred_region
      %39 = dma.done [#allocation3], 128
    $region17: #{tpu_custom_call.1} parent=1 // pred_fallthru
      _
    // Predicated region
    $region18: #{tpu_custom_call.1} parent=1 // pred_check
      _
    $region19: #{tpu_custom_call.1} parent=1 // pred_check_branch
      %41 = sbr.rel (0) target = $region21
    $region20: #{tpu_custom_call.1} parent=1 // pred_region
      %42 = dma.done [#allocation6], 2048
    $region21: #{tpu_custom_call.1} parent=1 // pred_fallthru
      _
    %p44 = scmp.eq.s32.totalorder 0, 0
    // Predicated region
    $region22: #{tpu_custom_call.1} parent=1 // pred_check
      %p45 = pneg %p44
    $region23: #{tpu_custom_call.1} parent=1 // pred_check_branch
      %47 = sbr.rel (%p45) target = $region25
    $region24: #{tpu_custom_call.1} parent=1 // pred_region
      %v48 = vld [vmem:[%s2] sm:$0x3]
      %v50 = vlaneseq
      %v51 = vshrl.u32 %v50, 7
      %v52 = vsub.s32 0, %v51
      %v53 = vrot.slane %v48, %v52
      %v54 = vlaneseq
      %v55 = vshrl.u32 %v54, 7
      %v56 = vsub.s32 1, %v55
      %v57 = vrot.slane %v48, %v56
      %60 = vst [vmem:[#allocation7] sm:$0xff] %v53
      %61 = vst [vmem:[#allocation7 + $0x8] sm:$0xff] %v57
      %62 = vst [vmem:[#allocation7 + $0x10] sm:$0xff] %v53
      %63 = vst [vmem:[#allocation7 + $0x18] sm:$0xff] %v57
    $region25: #{tpu_custom_call.1} parent=1 // pred_fallthru
      _
    %v64 = vld [vmem:[#allocation7] sm:$0xff]
    %v65 = vld [vmem:[#allocation7 + $0x8] sm:$0xff]
    %v66 = vld [vmem:[#allocation7 + $0x10] sm:$0xff]
    %v67 = vld [vmem:[#allocation7 + $0x18] sm:$0xff]
    %v68 = vld [vmem:[#allocation2] sm:$0xf]
    %v69 = vld [vmem:[#allocation2 + $0x4] sm:$0xf]
    %v70 = vld [vmem:[#allocation5] sm:$0xff]
    %v71 = vld [vmem:[#allocation5 + $0x8] sm:$0xff]
    %v72 = vld [vmem:[#allocation5 + $0x10] sm:$0xff]
    %v73 = vld [vmem:[#allocation5 + $0x18] sm:$0xff]
    %v74 = vld [vmem:[#allocation5 + $0x20] sm:$0xff]
    %v75 = vld [vmem:[#allocation5 + $0x28] sm:$0xff]
    %v76 = vld [vmem:[#allocation5 + $0x30] sm:$0xff]
    %v77 = vld [vmem:[#allocation5 + $0x38] sm:$0xff]
    %v78 = vld [vmem:[#allocation5 + $0x40] sm:$0xff]
    %v79 = vld [vmem:[#allocation5 + $0x48] sm:$0xff]
    %v80 = vld [vmem:[#allocation5 + $0x50] sm:$0xff]
    %v81 = vld [vmem:[#allocation5 + $0x58] sm:$0xff]
    %v82 = vld [vmem:[#allocation5 + $0x60] sm:$0xff]
    %v83 = vld [vmem:[#allocation5 + $0x68] sm:$0xff]
    %v84 = vld [vmem:[#allocation5 + $0x70] sm:$0xff]
    %v85 = vld [vmem:[#allocation5 + $0x78] sm:$0xff]
    %v88 = vunpack.c.l.b16 %v68
    %v89 = vunpack.c.l.b16 %v69
    %v90 = vpack.c.b16 %v89, %v88
    %v108 = vunpack.c.l.b16 %v70
    %v109 = vunpack.c.h.b16 %v70
    %v110 = vunpack.c.l.b16 %v71
    %v111 = vunpack.c.h.b16 %v71
    %v112 = vunpack.c.l.b16 %v72
    %v113 = vunpack.c.h.b16 %v72
    %v114 = vunpack.c.l.b16 %v73
    %v115 = vunpack.c.h.b16 %v73
    %v116 = vunpack.c.l.b16 %v74
    %v117 = vunpack.c.h.b16 %v74
    %v118 = vunpack.c.l.b16 %v75
    %v119 = vunpack.c.h.b16 %v75
    %v120 = vunpack.c.l.b16 %v76
    %v121 = vunpack.c.h.b16 %v76
    %v122 = vunpack.c.l.b16 %v77
    %v123 = vunpack.c.h.b16 %v77
    %v124 = vunpack.c.l.b16 %v78
    %v125 = vunpack.c.h.b16 %v78
    %v126 = vunpack.c.l.b16 %v79
    %v127 = vunpack.c.h.b16 %v79
    %v128 = vunpack.c.l.b16 %v80
    %v129 = vunpack.c.h.b16 %v80
    %v130 = vunpack.c.l.b16 %v81
    %v131 = vunpack.c.h.b16 %v81
    %v132 = vunpack.c.l.b16 %v82
    %v133 = vunpack.c.h.b16 %v82
    %v134 = vunpack.c.l.b16 %v83
    %v135 = vunpack.c.h.b16 %v83
    %v136 = vunpack.c.l.b16 %v84
    %v137 = vunpack.c.h.b16 %v84
    %v138 = vunpack.c.l.b16 %v85
    %v139 = vunpack.c.h.b16 %v85
    %v140 = vpack.c.b16 %v110, %v108
    %v141 = vpack.c.b16 %v111, %v109
    %v142 = vpack.c.b16 %v114, %v112
    %v143 = vpack.c.b16 %v115, %v113
    %v144 = vpack.c.b16 %v118, %v116
    %v145 = vpack.c.b16 %v119, %v117
    %v146 = vpack.c.b16 %v122, %v120
    %v147 = vpack.c.b16 %v123, %v121
    %v148 = vpack.c.b16 %v126, %v124
    %v149 = vpack.c.b16 %v127, %v125
    %v150 = vpack.c.b16 %v130, %v128
    %v151 = vpack.c.b16 %v131, %v129
    %v152 = vpack.c.b16 %v134, %v132
    %v153 = vpack.c.b16 %v135, %v133
    %v154 = vpack.c.b16 %v138, %v136
    %v155 = vpack.c.b16 %v139, %v137
    %172 = vmatprep.subr.bf16.mxu0 %v141
    %173 = vmatpush1.bf16.msra.mxu0 %v140
    %174 = vmatprep.subr.bf16.mxu0 %v143
    %175 = vmatpush1.bf16.msra.mxu0 %v142
    %176 = vmatprep.subr.bf16.mxu0 %v145
    %177 = vmatpush1.bf16.msra.mxu0 %v144
    %178 = vmatprep.subr.bf16.mxu0 %v147
    %179 = vmatpush1.bf16.msra.mxu0 %v146
    %180 = vmatprep.subr.bf16.mxu0 %v149
    %181 = vmatpush1.bf16.msra.mxu0 %v148
    %182 = vmatprep.subr.bf16.mxu0 %v151
    %183 = vmatpush1.bf16.msra.mxu0 %v150
    %184 = vmatprep.subr.bf16.mxu0 %v153
    %185 = vmatpush1.bf16.msra.mxu0 %v152
    %186 = vmatprep.subr.bf16.mxu0 %v155
    %187 = vmatpush1.bf16.msra.mxu0 %v154
    %188 = vmatprep.subr.bf16.mxu0 0
    %189 = vmatpush1.bf16.msra.mxu0 0
    %190 = vmatprep.subr.bf16.mxu0 0
    %191 = vmatpush1.bf16.msra.mxu0 0
    %192 = vmatprep.subr.bf16.mxu0 0
    %193 = vmatpush1.bf16.msra.mxu0 0
    %194 = vmatprep.subr.bf16.mxu0 0
    %195 = vmatpush1.bf16.msra.mxu0 0
    %196 = vmatprep.subr.bf16.mxu0 0
    %197 = vmatpush1.bf16.msra.mxu0 0
    %198 = vmatprep.subr.bf16.mxu0 0
    %199 = vmatpush1.bf16.msra.mxu0 0
    %200 = vmatprep.subr.bf16.mxu0 0
    %201 = vmatpush1.bf16.msra.mxu0 0
    %202 = vmatprep.subr.bf16.mxu0 0
    %203 = vmatpush1.bf16.msra.mxu0 0
    %204 = vmatprep.mubr.bf16.mxu0 0
    %205 = vmatmul.mubr.bf16.gmra.mrb[0].mxu0 %v90
    %v206 = vpop.f32.mrb[0].mxu0
    %v207 = vadd.f32 0.0, %v206
    %v208 = vpop.f32.mrb[0].mxu0
    %v209 = vadd.f32 0.0, %v208
    %v210 = vpop.f32.mrb[0].mxu0
    %v211 = vadd.f32 0.0, %v210
    %v212 = vpop.f32.mrb[0].mxu0
    %v213 = vadd.f32 0.0, %v212
    %214 = vdwg.mxu0
    %v215 = vadd.f32 %v64, %v207
    %v216 = vadd.f32 %v65, %v209
    %v217 = vadd.f32 %v66, %v211
    %v218 = vadd.f32 %v67, %v213
    %219 = vst [vmem:[#allocation7] sm:$0xff] %v215
    %220 = vst [vmem:[#allocation7 + $0x8] sm:$0xff] %v216
    %221 = vst [vmem:[#allocation7 + $0x10] sm:$0xff] %v217
    %222 = vst [vmem:[#allocation7 + $0x18] sm:$0xff] %v218
    // Predicated region
    $region26: #{tpu_custom_call.1} parent=1 // pred_check
      _
    $region27: #{tpu_custom_call.1} parent=1 // pred_check_branch
      %224 = sbr.rel (0) target = $region29
    $region28: #{tpu_custom_call.1} parent=1 // pred_region
      %s226 = ssub.s32 512, 512
      %227 = vsyncadd [#allocation4], %s226
      %s228 = sshll.u32 [#allocation7], 4
      %s229 = int_to_ptr.vmem [resolvable:$true] %s228
      %234 = dma.vmem_to_hbm [thread:$0]  %s229, 512, %s3, [#allocation4], 256, 256, 16
    $region29: #{tpu_custom_call.1} parent=1 // pred_fallthru
      _
    // Predicated region
    $region30: #{tpu_custom_call.1} parent=1 // pred_check
      _
    $region31: #{tpu_custom_call.1} parent=1 // pred_check_branch
      %236 = sbr.rel (0) target = $region33
    $region32: #{tpu_custom_call.1} parent=1 // pred_region
      %237 = dma.done [#allocation4], 512
    $region33: #{tpu_custom_call.1} parent=1 // pred_fallthru
      _
    %238 = vsyncpa [#allocation3], 1
    %239 = vsyncpa [#allocation6], 1
    %240 = vsyncpa [#allocation4], 1

</llo_original>
